<compile_context>
chip_gen: v7x
topology: tpu7x:2x2x1
jax: 0.10.0
libtpu: 0.0.40
codegen_flags: <defaults>
</compile_context>

<pallas_src>
import jax
import jax.numpy as jnp
from jax.experimental import pallas as pl
from jax.experimental.pallas import tpu as pltpu

BN_EPS = 1e-5
LANE = 128  # hidden width padded to a full lane vreg


def prediction_nn_kernel(b2_ref, x_ref, w1_ref, gb_ref, w2_ref, out_ref):
    # Single grid point: everything fits in VMEM.  One MXU matmul, then the
    # BN/ReLU chain on full-lane vregs, then a VPU mul + lane reduce.
    x = x_ref[...]                                       # (B, E)       f32
    w1 = w1_ref[...]                                     # (E, LANE)    f32 (zero-padded past H)

    # dense (no bias)
    h = jnp.dot(x, w1, preferred_element_type=jnp.float32)   # (B, LANE)

    # BatchNorm1d, training mode: per-feature mean/var over the batch axis,
    # biased variance, eps inside the rsqrt.  Padded columns are exactly 0
    # (h=0 -> centered=0, gamma=0, beta=0 -> stay 0).
    mean = jnp.mean(h, axis=0, keepdims=True)                 # (1, LANE)
    centered = h - mean
    var = jnp.mean(centered * centered, axis=0, keepdims=True)
    gamma = gb_ref[0:1, :]                                    # (1, LANE)
    beta = gb_ref[1:2, :]                                     # (1, LANE)
    h_bn = centered * jax.lax.rsqrt(var + BN_EPS) * gamma + beta

    # ReLU
    h_act = jnp.maximum(h_bn, 0.0)                            # (B, LANE)

    # output_dense as VPU multiply + lane reduce (avoids an N=1 MXU matmul).
    w2_row = w2_ref[...]                                      # (1, LANE), zero-padded past H
    y = jnp.sum(h_act * w2_row, axis=1, keepdims=True) + b2_ref[0]   # (B, 1)

    # Lane-dense (unmasked) store: broadcast the scalar-per-row across the
    # full 128-lane output block; wrapper slices column 0.
    out_ref[...] = jnp.broadcast_to(y, out_ref.shape)


def prediction_nn_forward(x, w1_pad, gamma_beta, w2_row, b2_scalar):
    """x: (B, E) f32.  w1_pad: (E, 128).  gamma_beta: (2, 128).
    w2_row: (1, 128).  b2_scalar: (1,) f32 (lives in SMEM)."""
    B = x.shape[0]
    vmem = pl.BlockSpec(memory_space=pltpu.MemorySpace.VMEM)
    smem = pl.BlockSpec(memory_space=pltpu.MemorySpace.SMEM)
    out = pl.pallas_call(
        prediction_nn_kernel,
        out_shape=jax.ShapeDtypeStruct((B, LANE), jnp.float32),
        in_specs=[smem, vmem, vmem, vmem, vmem],
        out_specs=vmem,
    )(b2_scalar, x, w1_pad, gamma_beta, w2_row)
    return out[:, :1]                                          # (B, 1)


def reference_forward(x, w1_t, gamma, beta, w2_t, b2):
    h = x @ w1_t
    mean = jnp.mean(h, axis=0, keepdims=True)
    var = jnp.mean((h - mean) ** 2, axis=0, keepdims=True)
    h = (h - mean) * jax.lax.rsqrt(var + BN_EPS) * gamma + beta
    h = jnp.maximum(h, 0.0)
    return h @ w2_t + b2


if __name__ == "__main__":
    # Small shapes consistent with the module: batch=8, mof_emb_size=64, hidden=32.
    B, E, H = 8, 64, 32

    key = jax.random.PRNGKey(0)
    kx, k1, kg, kb, k2, kb2 = jax.random.split(key, 6)

    x = jax.random.normal(kx, (B, E), dtype=jnp.float32)

    # Deterministic synthetic parameters (shapes follow the module __init__).
    # dense: Linear(E -> 32, bias=False), stored pre-transposed as (E, H).
    w1_t = (jax.random.uniform(k1, (E, H), dtype=jnp.float32) - 0.5) * (2.0 / jnp.sqrt(E))
    # hidden_batchnorm: BatchNorm1d(32) affine params (perturbed to be nontrivial).
    gamma = 1.0 + 0.1 * jax.random.normal(kg, (1, H), dtype=jnp.float32)
    beta = 0.1 * jax.random.normal(kb, (1, H), dtype=jnp.float32)
    # output_dense: Linear(32 -> 1), stored pre-transposed as (H, 1) plus bias (1, 1).
    w2_t = (jax.random.uniform(k2, (H, 1), dtype=jnp.float32) - 0.5) * (2.0 / jnp.sqrt(H))
    b2 = 0.01 * jax.random.normal(kb2, (1, 1), dtype=jnp.float32)

    # Pad hidden width to a full 128-lane vreg.  Zero padding is exact for this
    # network: padded h columns are 0, BN keeps them 0 (gamma=beta=0), ReLU keeps
    # them 0, and padded w2 entries are 0 so the lane reduce is unchanged.
    w1_pad = jnp.zeros((E, LANE), jnp.float32).at[:, :H].set(w1_t)
    gamma_pad = jnp.zeros((1, LANE), jnp.float32).at[:, :H].set(gamma)
    beta_pad = jnp.zeros((1, LANE), jnp.float32).at[:, :H].set(beta)
    gamma_beta = jnp.concatenate([gamma_pad, beta_pad], axis=0)          # (2, LANE)
    w2_row = jnp.zeros((1, LANE), jnp.float32).at[:, :H].set(w2_t.T)     # (1, LANE)
    b2_scalar = b2.reshape(1)                                            # (1,) -> SMEM

    out = prediction_nn_forward(x, w1_pad, gamma_beta, w2_row, b2_scalar)
    out = jax.block_until_ready(out)

    ref = reference_forward(x, w1_t, gamma, beta, w2_t, b2)
    assert out.shape == (B, 1)
    assert jnp.allclose(out, ref, atol=1e-4, rtol=1e-4), "mismatch vs JAX reference"

    print("KERNEL_OK")
</pallas_src>

<mosaic_0001>
module attributes {stable_mosaic.version = 11 : i64} {
  func.func @prediction_nn_kernel(%arg0: memref<1xf32, #tpu.memory_space<smem>>, %arg1: memref<8x64xf32, #tpu.memory_space<vmem>>, %arg2: memref<64x128xf32, #tpu.memory_space<vmem>>, %arg3: memref<2x128xf32, #tpu.memory_space<vmem>>, %arg4: memref<1x128xf32, #tpu.memory_space<vmem>>, %arg5: memref<8x128xf32, #tpu.memory_space<vmem>>) attributes {dimension_semantics = [], scalar_prefetch = 0 : i64, scratch_operands = 0 : i64, tpu.core_type = #tpu.core_type<tc>} {
    %c0 = arith.constant 0 : index
    %c0_0 = arith.constant 0 : index
    %0 = vector.load %arg1[%c0, %c0_0] : memref<8x64xf32, #tpu.memory_space<vmem>>, vector<8x64xf32>
    %c0_1 = arith.constant 0 : index
    %c0_2 = arith.constant 0 : index
    %1 = vector.load %arg2[%c0_1, %c0_2] : memref<64x128xf32, #tpu.memory_space<vmem>>, vector<64x128xf32>
    %cst = arith.constant dense<0.000000e+00> : vector<8x128xf32>
    %2 = tpu.matmul %0, %1, %cst {dimension_numbers = #tpu.dot_dimension_numbers<[1], [0], [0], [1], [0, 0, 1, 1], [], []>} : vector<8x64xf32>, vector<64x128xf32>, vector<8x128xf32> -> vector<8x128xf32>
    %cst_3 = arith.constant dense<0.000000e+00> : vector<128xf32>
    %3 = vector.multi_reduction <add>, %2, %cst_3 [0] : vector<8x128xf32> to vector<128xf32>
    %4 = vector.shape_cast %3 : vector<128xf32> to vector<1x128xf32>
    %cst_4 = arith.constant 8.000000e+00 : f32
    %5 = vector.broadcast %cst_4 : f32 to vector<1x128xf32>
    %6 = arith.divf %4, %5 : vector<1x128xf32>
    %7 = vector.broadcast %6 : vector<1x128xf32> to vector<8x128xf32>
    %8 = arith.subf %2, %7 : vector<8x128xf32>
    %9 = arith.mulf %8, %8 : vector<8x128xf32>
    %cst_5 = arith.constant dense<0.000000e+00> : vector<128xf32>
    %10 = vector.multi_reduction <add>, %9, %cst_5 [0] : vector<8x128xf32> to vector<128xf32>
    %11 = vector.shape_cast %10 : vector<128xf32> to vector<1x128xf32>
    %cst_6 = arith.constant 8.000000e+00 : f32
    %12 = vector.broadcast %cst_6 : f32 to vector<1x128xf32>
    %13 = arith.divf %11, %12 : vector<1x128xf32>
    %c0_7 = arith.constant 0 : index
    %c0_8 = arith.constant 0 : index
    %14 = vector.load %arg3[%c0_7, %c0_8] : memref<2x128xf32, #tpu.memory_space<vmem>>, vector<1x128xf32>
    %c1 = arith.constant 1 : index
    %c0_9 = arith.constant 0 : index
    %15 = vector.load %arg3[%c1, %c0_9] : memref<2x128xf32, #tpu.memory_space<vmem>>, vector<1x128xf32>
    %cst_10 = arith.constant 9.99999974E-6 : f32
    %16 = vector.broadcast %cst_10 : f32 to vector<1x128xf32>
    %17 = arith.addf %13, %16 : vector<1x128xf32>
    %18 = math.rsqrt %17 : vector<1x128xf32>
    %19 = vector.broadcast %18 : vector<1x128xf32> to vector<8x128xf32>
    %20 = arith.mulf %8, %19 : vector<8x128xf32>
    %21 = vector.broadcast %14 : vector<1x128xf32> to vector<8x128xf32>
    %22 = arith.mulf %20, %21 : vector<8x128xf32>
    %23 = vector.broadcast %15 : vector<1x128xf32> to vector<8x128xf32>
    %24 = arith.addf %22, %23 : vector<8x128xf32>
    %cst_11 = arith.constant 0.000000e+00 : f32
    %25 = vector.broadcast %cst_11 : f32 to vector<8x128xf32>
    %26 = arith.maximumf %24, %25 : vector<8x128xf32>
    %c0_12 = arith.constant 0 : index
    %c0_13 = arith.constant 0 : index
    %27 = vector.load %arg4[%c0_12, %c0_13] : memref<1x128xf32, #tpu.memory_space<vmem>>, vector<1x128xf32>
    %28 = vector.broadcast %27 : vector<1x128xf32> to vector<8x128xf32>
    %29 = arith.mulf %26, %28 : vector<8x128xf32>
    %cst_14 = arith.constant dense<0.000000e+00> : vector<8xf32>
    %30 = vector.multi_reduction <add>, %29, %cst_14 [1] : vector<8x128xf32> to vector<8xf32>
    %31 = vector.shape_cast %30 : vector<8xf32> to vector<8x1xf32>
    %c0_15 = arith.constant 0 : index
    %32 = memref.load %arg0[%c0_15] : memref<1xf32, #tpu.memory_space<smem>>
    %33 = vector.broadcast %32 : f32 to vector<8x1xf32>
    %34 = arith.addf %31, %33 : vector<8x1xf32>
    %35 = vector.shape_cast %34 : vector<8x1xf32> to vector<8x1xf32>
    %36 = vector.broadcast %35 : vector<8x1xf32> to vector<8x128xf32>
    %c0_16 = arith.constant 0 : index
    %c0_17 = arith.constant 0 : index
    %37 = vector.load %arg5[%c0_16, %c0_17] : memref<8x128xf32, #tpu.memory_space<vmem>>, vector<8x128xf32>
    tpu.vector_store %arg5[%c0_16, %c0_17], %36 {strides = array<i32>} : memref<8x128xf32, #tpu.memory_space<vmem>>, vector<8x128xf32>,
    return
  }
}

</mosaic_0001>

<llo_original>
// kernel: tpu_custom_call.1
$region0: #{tpu_custom_call.1}
  #allocation0 [shape = 'u32[]', space=smem, size = 0x4, offset = 0x4, fixed_abs, tag = 'smem constant byte address 0x4 - core index']
  #allocation1 [shape = 'u32[144,128]{1,0:T(1,128)}', space=vmem, size = 0x12000, scoped, tag = 'internal scratch']
  #allocation2 [shape = 'f32[1]{0:T(128)S(6)}', space=smem, size = 0x200, scoped, tag = 'scoped memory for tpu_custom_call.1']
  %s0 = inlined_call_operand.<no memory space> [shape: f32[1], index: 0, kind: input, shape index: {}]
  %s1 = inlined_call_operand.hbm [shape: f32[8,64], index: 1, kind: input, shape index: {}]
  %s2 = inlined_call_operand.hbm [shape: f32[64,128], index: 2, kind: input, shape index: {}]
  %s3 = inlined_call_operand.vmem [shape: f32[2,128], index: 3, kind: input, shape index: {}]
  %s4 = inlined_call_operand.vmem [shape: f32[1,128], index: 4, kind: input, shape index: {}]
  %s5 = inlined_call_operand.hbm [shape: f32[8,128], index: 5, kind: output, shape index: {}]
  %s6 = sld [smem:[#allocation0]]
  $region38: #{tpu_custom_call.1} parent=0
    _
  %s8 = ssub.s32 1, %s6
  %s9 = scalar_select 0, %s8, %s6
  %10 = sst [smem:[#allocation2]] %s0
  $region1: #{tpu_custom_call.1} parent=0
    #allocation3 [shape = 'u8[4096]{0}', space=vmem, size = 0x1000, scoped, tag = 'input window, operand 1, single buffered']
    #allocation4 [shape = 's32[1]{0}', space=sflag, size = 0x4, scoped, tag = 'scoped memory for tpu_custom_call.1']
    #allocation5 [shape = 's32[1]{0}', space=sflag, size = 0x4, scoped, tag = 'scoped memory for tpu_custom_call.1']
    #allocation6 [shape = 'u8[32768]{0}', space=vmem, size = 0x8000, scoped, tag = 'input window, operand 2, single buffered']
    #allocation7 [shape = 's32[1]{0}', space=sflag, size = 0x4, scoped, tag = 'scoped memory for tpu_custom_call.1']
    #allocation8 [shape = 'u8[4096]{0}', space=vmem, size = 0x1000, scoped, tag = 'output window, operand 0, single buffered']
    %11 = vsyncpa [#allocation4], 0
    %12 = vsyncpa [#allocation7], 0
    %13 = vsyncpa [#allocation5], 0
    // Predicated region
    $region2: #{tpu_custom_call.1} parent=1 // pred_check
      _
    $region3: #{tpu_custom_call.1} parent=1 // pred_check_branch
      %15 = sbr.rel (0) target = $region5
    $region4: #{tpu_custom_call.1} parent=1 // pred_region
      _
    $region5: #{tpu_custom_call.1} parent=1 // pred_fallthru
      _
    // Predicated region
    $region6: #{tpu_custom_call.1} parent=1 // pred_check
      _
    $region7: #{tpu_custom_call.1} parent=1 // pred_check_branch
      %17 = sbr.rel (0) target = $region9
    $region8: #{tpu_custom_call.1} parent=1 // pred_region
      %s19 = ssub.s32 128, 128
      %20 = vsyncadd [#allocation4], %s19
      %s22 = sshll.u32 [#allocation3], 4
      %s23 = int_to_ptr.vmem [resolvable:$true] %s22
      %25 = dma.hbm_to_vmem [thread:$0]  %s1, 128, %s23, [#allocation4]
    $region9: #{tpu_custom_call.1} parent=1 // pred_fallthru
      _
    // Predicated region
    $region10: #{tpu_custom_call.1} parent=1 // pred_check
      _
    $region11: #{tpu_custom_call.1} parent=1 // pred_check_branch
      %27 = sbr.rel (0) target = $region13
    $region12: #{tpu_custom_call.1} parent=1 // pred_region
      %s29 = ssub.s32 1024, 1024
      %30 = vsyncadd [#allocation7], %s29
      %s31 = sshll.u32 [#allocation6], 4
      %s32 = int_to_ptr.vmem [resolvable:$true] %s31
      %37 = dma.hbm_to_vmem [thread:$0]  %s2, 1024, %s32, [#allocation7], 128, 128, 8
    $region13: #{tpu_custom_call.1} parent=1 // pred_fallthru
      _
    // Predicated region
    $region14: #{tpu_custom_call.1} parent=1 // pred_check
      _
    $region15: #{tpu_custom_call.1} parent=1 // pred_check_branch
      %39 = sbr.rel (0) target = $region17
    $region16: #{tpu_custom_call.1} parent=1 // pred_region
      _
    $region17: #{tpu_custom_call.1} parent=1 // pred_fallthru
      _
    // Predicated region
    $region18: #{tpu_custom_call.1} parent=1 // pred_check
      _
    $region19: #{tpu_custom_call.1} parent=1 // pred_check_branch
      %41 = sbr.rel (0) target = $region21
    $region20: #{tpu_custom_call.1} parent=1 // pred_region
      _
    $region21: #{tpu_custom_call.1} parent=1 // pred_fallthru
      _
    // Predicated region
    $region22: #{tpu_custom_call.1} parent=1 // pred_check
      _
    $region23: #{tpu_custom_call.1} parent=1 // pred_check_branch
      %43 = sbr.rel (0) target = $region25
    $region24: #{tpu_custom_call.1} parent=1 // pred_region
      %44 = dma.done [#allocation4], 128
    $region25: #{tpu_custom_call.1} parent=1 // pred_fallthru
      _
    // Predicated region
    $region26: #{tpu_custom_call.1} parent=1 // pred_check
      _
    $region27: #{tpu_custom_call.1} parent=1 // pred_check_branch
      %46 = sbr.rel (0) target = $region29
    $region28: #{tpu_custom_call.1} parent=1 // pred_region
      %47 = dma.done [#allocation7], 1024
    $region29: #{tpu_custom_call.1} parent=1 // pred_fallthru
      _
    %v48 = vld [vmem:[#allocation3] sm:$0xff]
    %v49 = vld [vmem:[#allocation6] sm:$0xff]
    %v50 = vld [vmem:[#allocation6 + $0x8] sm:$0xff]
    %v51 = vld [vmem:[#allocation6 + $0x10] sm:$0xff]
    %v52 = vld [vmem:[#allocation6 + $0x18] sm:$0xff]
    %v53 = vld [vmem:[#allocation6 + $0x20] sm:$0xff]
    %v54 = vld [vmem:[#allocation6 + $0x28] sm:$0xff]
    %v55 = vld [vmem:[#allocation6 + $0x30] sm:$0xff]
    %v56 = vld [vmem:[#allocation6 + $0x38] sm:$0xff]
    %vm57 = vcmask 523264
    %v59 = vsel %vm57, %v48, 0
    %61 = vmatprep.subr.mxu0 0.0
    %62 = vmatpush1.msra.mxu0 %v49
    %63 = vmatprep.subr.mxu0 0.0
    %64 = vmatpush1.msra.mxu0 %v50
    %65 = vmatprep.subr.mxu0 0.0
    %66 = vmatpush1.msra.mxu0 %v51
    %67 = vmatprep.subr.mxu0 0.0
    %68 = vmatpush1.msra.mxu0 %v52
    %69 = vmatprep.subr.mxu0 0.0
    %70 = vmatpush1.msra.mxu0 %v53
    %71 = vmatprep.subr.mxu0 0.0
    %72 = vmatpush1.msra.mxu0 %v54
    %73 = vmatprep.subr.mxu0 0.0
    %74 = vmatpush1.msra.mxu0 %v55
    %75 = vmatprep.subr.mxu0 0.0
    %76 = vmatpush1.msra.mxu0 %v56
    %77 = vmatprep.subr.mxu0 0.0
    %78 = vmatpush1.msra.mxu0 0.0
    %79 = vmatprep.subr.mxu0 0.0
    %80 = vmatpush1.msra.mxu0 0.0
    %81 = vmatprep.subr.mxu0 0.0
    %82 = vmatpush1.msra.mxu0 0.0
    %83 = vmatprep.subr.mxu0 0.0
    %84 = vmatpush1.msra.mxu0 0.0
    %85 = vmatprep.subr.mxu0 0.0
    %86 = vmatpush1.msra.mxu0 0.0
    %87 = vmatprep.subr.mxu0 0.0
    %88 = vmatpush1.msra.mxu0 0.0
    %89 = vmatprep.subr.mxu0 0.0
    %90 = vmatpush1.msra.mxu0 0.0
    %91 = vmatprep.subr.mxu0 0.0
    %92 = vmatpush1.msra.mxu0 0.0
    %93 = vmatprep.subr.mxu0 0.0
    %94 = vmatpush1.msra.mxu0 0.0
    %95 = vmatprep.subr.mxu0 0.0
    %96 = vmatpush1.msra.mxu0 0.0
    %97 = vmatprep.subr.mxu0 0.0
    %98 = vmatpush1.msra.mxu0 0.0
    %99 = vmatprep.subr.mxu0 0.0
    %100 = vmatpush1.msra.mxu0 0.0
    %101 = vmatprep.subr.mxu0 0.0
    %102 = vmatpush1.msra.mxu0 0.0
    %103 = vmatprep.subr.mxu0 0.0
    %104 = vmatpush1.msra.mxu0 0.0
    %105 = vmatprep.subr.mxu0 0.0
    %106 = vmatpush1.msra.mxu0 0.0
    %107 = vmatprep.subr.mxu0 0.0
    %108 = vmatpush1.msra.mxu0 0.0
    %109 = vmatprep.subr.mxu0 0.0
    %110 = vmatpush1.msra.mxu0 0.0
    %111 = vmatprep.subr.mxu0 0.0
    %112 = vmatpush1.msra.mxu0 0.0
    %113 = vmatprep.subr.mxu0 0.0
    %114 = vmatpush1.msra.mxu0 0.0
    %115 = vmatprep.subr.mxu0 0.0
    %116 = vmatpush1.msra.mxu0 0.0
    %117 = vmatprep.subr.mxu0 0.0
    %118 = vmatpush1.msra.mxu0 0.0
    %119 = vmatprep.subr.mxu0 0.0
    %120 = vmatpush1.msra.mxu0 0.0
    %121 = vmatprep.subr.mxu0 0.0
    %122 = vmatpush1.msra.mxu0 0.0
    %123 = vmatprep.subr.mxu0 0.0
    %124 = vmatpush1.msra.mxu0 0.0
    %125 = vmatprep.mubr.f32.mxu0 0.0
    %126 = vmatmul.mubr.f32.gmra.mrb[0].mxu0 %v59
    %v127 = vpop.f32.mrb[0].mxu0
    %v128 = vadd.f32 0.0, %v127
    %v129 = vpop.f32.mrb[0].mxu0
    %130 = vdwg.mxu0
    %v131 = vrot.slane %v128, 4
    %v132 = vadd.f32 %v128, %v131
    %v133 = vrot.slane %v132, 2
    %v134 = vadd.f32 %v132, %v133
    %v135 = vrot.slane %v134, 1
    %v136 = vadd.f32 %v134, %v135
    %v137 = vrcp.pop 8.0
    %v138 = vmul.f32 %v136, %v137
    %v139 = vsub.f32 %v128, %v138
    %v140 = vmul.f32 %v139, %v139
    %v141 = vrot.slane %v140, 4
    %v142 = vadd.f32 %v140, %v141
    %v143 = vrot.slane %v142, 2
    %v144 = vadd.f32 %v142, %v143
    %v145 = vrot.slane %v144, 1
    %v146 = vadd.f32 %v144, %v145
    %v147 = vmul.f32 %v146, %v137
    %v148 = vld [vmem:[%s3] sm:$0x1]
    %v149 = vld [vmem:[%s3 + $0x1] sm:$0x1]
    %v150 = vadd.f32 %v147, 1e-05
    %v151 = vrsqrt.pop %v150
    %v152 = vmul.f32 %v139, %v151
    %v153 = vlaneseq
    %v154 = vshrl.u32 %v153, 7
    %v155 = vsub.s32 0, %v154
    %v156 = vrot.slane %v148, %v155
    %v157 = vmul.f32 %v152, %v156
    %v158 = vlaneseq
    %v159 = vshrl.u32 %v158, 7
    %v160 = vsub.s32 0, %v159
    %v161 = vrot.slane %v149, %v160
    %v162 = vadd.f32 %v157, %v161
    %v163 = vmax.f32 %v162, 0.0
    %v164 = vld [vmem:[%s4] sm:$0x1]
    %v166 = vlaneseq
    %v167 = vshrl.u32 %v166, 7
    %v168 = vsub.s32 0, %v167
    %v169 = vrot.slane %v164, %v168
    %v171 = vmul.f32 %v163, %v169
    %172 = vadd.xlane.f32.xlu0 %v171
    %v173 = vpop.xlane.xlu0 %172
    %s174 = sld [smem:[#allocation2]]
    %v175 = vstv %s174
    %v176 = vadd.f32 %v173, %v175
    %177 = vst [vmem:[#allocation8] sm:$0xff] %v176
    // Predicated region
    $region30: #{tpu_custom_call.1} parent=1 // pred_check
      _
    $region31: #{tpu_custom_call.1} parent=1 // pred_check_branch
      %179 = sbr.rel (0) target = $region33
    $region32: #{tpu_custom_call.1} parent=1 // pred_region
      %s181 = ssub.s32 128, 128
      %182 = vsyncadd [#allocation5], %s181
      %s184 = sshll.u32 [#allocation8], 4
      %s185 = int_to_ptr.vmem [resolvable:$true] %s184
      %187 = dma.vmem_to_hbm [thread:$0]  %s185, 128, %s5, [#allocation5]
    $region33: #{tpu_custom_call.1} parent=1 // pred_fallthru
      _
    // Predicated region
    $region34: #{tpu_custom_call.1} parent=1 // pred_check
      _
    $region35: #{tpu_custom_call.1} parent=1 // pred_check_branch
      %189 = sbr.rel (0) target = $region37
    $region36: #{tpu_custom_call.1} parent=1 // pred_region
      %190 = dma.done [#allocation5], 128
    $region37: #{tpu_custom_call.1} parent=1 // pred_fallthru
      _
    %191 = vsyncpa [#allocation4], 1
    %192 = vsyncpa [#allocation7], 1
    %193 = vsyncpa [#allocation5], 1

</llo_original>
